<compile_context>
chip_gen: v6e
topology: v6e:2x2x1
jax: 0.10.0
libtpu: 0.0.40
codegen_flags: <defaults>
</compile_context>

<pallas_src>
import functools

import jax
import jax.numpy as jnp
from jax.experimental import pallas as pl
from jax.experimental.pallas import tpu as pltpu

_MOCK_OBS_DIM = 1
_LANE = 128
_SUBLANE = 8

# A constant fill is strictly cheaper as a fused jnp.full (one HBM write, no
# dispatch, no padded-slab slice).  Keep the Pallas path only for explicit use
# / truly enormous batches.
_PALLAS_MIN_BATCH = 1 << 20


def _generation_config():
    """Per-TPU-generation (block_rows, vmem_limit_bytes, dim_semantics)."""
    kind = ""
    try:
        kind = jax.devices()[0].device_kind.lower()
    except Exception:  # pragma: no cover - no device visible
        pass
    if "v7" in kind:
        # 8 MiB blocks (16 MiB double-buffered) within 64 MiB physical VMEM;
        # shard blocks across the two TensorCores.
        block_rows = 16384
        vmem_limit = 48 << 20
        sem = getattr(pltpu, "CORE_PARALLEL", "parallel")
    elif "v6" in kind:
        # 8 MiB blocks; 16 MiB double-buffered fits the 32 MiB default scoped
        # VMEM, raise the limit anyway for headroom.
        block_rows = 16384
        vmem_limit = 48 << 20
        sem = "parallel"
    else:
        # v5e (and unknown chips): 16 MiB default scoped VMEM -> 4 MiB blocks
        # (8 MiB double-buffered), modest explicit raise of the limit.
        block_rows = 8192
        vmem_limit = 32 << 20
        sem = "parallel"
    return block_rows, vmem_limit, sem


def _mock_prob_kernel(value_ref, out_ref):
    # value_ref: SMEM (1,) scalar-prefetch ref holding self.value
    # out_ref:   VMEM (block_rows, 128) lane-dense output tile (unmasked vst)
    out_ref[...] = jnp.full(out_ref.shape, value_ref[0], dtype=out_ref.dtype)


@functools.partial(jax.jit, static_argnames=("batch_size",))
def _mock_prob_pallas(value_arr, batch_size):
    """Lane-dense, batch-tiled splat of `value` into a (batch, 1) array."""
    max_block_rows, vmem_limit, sem = _generation_config()

    # Exactly ceil(batch/128) rows -- no rounding up to a whole block.  The
    # block shape stays (8,128)-aligned; Pallas masks the ragged last block.
    rows = pl.cdiv(batch_size, _LANE)
    block_rows = min(pl.cdiv(rows, _SUBLANE) * _SUBLANE, max_block_rows)
    grid = (pl.cdiv(rows, block_rows),)

    out = pl.pallas_call(
        _mock_prob_kernel,
        out_shape=jax.ShapeDtypeStruct((rows, _LANE), jnp.float32),
        grid_spec=pltpu.PrefetchScalarGridSpec(
            num_scalar_prefetch=1,  # value lands in SMEM before the grid runs
            grid=grid,
            in_specs=[],
            out_specs=pl.BlockSpec(
                (block_rows, _LANE), lambda i, value_ref: (i, 0)
            ),
        ),
        compiler_params=pltpu.CompilerParams(
            dimension_semantics=(sem,),
            vmem_limit_bytes=vmem_limit,
        ),
    )(value_arr)

    if rows * _LANE == batch_size:
        # Lane-aligned batch: pure layout reshape, no slice copy pass.
        return out.reshape(batch_size, _MOCK_OBS_DIM)
    return out.reshape(-1)[:batch_size].reshape(batch_size, _MOCK_OBS_DIM)


def mock_prob_model_forward(x, value, *, use_pallas=None):
    """Pallas implementation of MockProbModel.forward.

    Returns (value * ones(batch_size, _MOCK_OBS_DIM), None).
    """
    batch_size = x.shape[0] if x.ndim > 1 else 1
    if use_pallas is None:
        use_pallas = batch_size >= _PALLAS_MIN_BATCH
    if not use_pallas:
        # Default path: a fused constant fill is the HBM-roofline optimum here.
        return jnp.full((batch_size, _MOCK_OBS_DIM), value, jnp.float32), None
    value_arr = jnp.asarray([value], dtype=jnp.float32)
    return _mock_prob_pallas(value_arr, batch_size), None


class MockProbModelPallas:
    """Mirror of the PyTorch MockProbModel (deterministic parameter init)."""

    def __init__(self):
        self.value = 3.0                       # deterministic stand-in for self.value
        self.p = jnp.ones((1,), jnp.float32)   # unused in forward (matches nn.Parameter)
        self.out_size = _MOCK_OBS_DIM
        self.deterministic = True

    def __call__(self, x, *, use_pallas=None):
        return mock_prob_model_forward(x, self.value, use_pallas=use_pallas)


if __name__ == "__main__":
    key = jax.random.PRNGKey(0)
    model = MockProbModelPallas()

    # Small input consistent with the module: (batch=2, features=4).
    x_small = jax.random.normal(key, (2, 4), dtype=jnp.float32)

    # 1) Force the Pallas path once on the small batch to exercise the kernel.
    out_p, aux_p = model(x_small, use_pallas=True)
    out_p = jax.block_until_ready(out_p)
    expected_small = model.value * jnp.ones((2, _MOCK_OBS_DIM), jnp.float32)
    assert out_p.shape == (2, _MOCK_OBS_DIM) and out_p.dtype == jnp.float32
    assert aux_p is None
    assert jnp.allclose(out_p, expected_small)

    # 2) Default (auto) path for small batch: jnp.full fast path, same result.
    out_f, aux_f = model(x_small)
    out_f = jax.block_until_ready(out_f)
    assert aux_f is None
    assert jnp.allclose(out_f, expected_small)

    # 3) Non-lane-aligned batch through the Pallas path: exercises the ragged
    #    last block (rows not a multiple of block_rows) + wrapper slice.
    x_big = jax.random.normal(key, (1040, 4), dtype=jnp.float32)
    out_b, aux_b = model(x_big, use_pallas=True)
    out_b = jax.block_until_ready(out_b)
    assert out_b.shape == (1040, _MOCK_OBS_DIM)
    assert aux_b is None
    assert jnp.allclose(out_b, model.value * jnp.ones((1040, 1), jnp.float32))

    # 4) Lane-aligned batch: hits the no-slice reshape path.
    x_aligned = jax.random.normal(key, (1024, 4), dtype=jnp.float32)
    out_a, aux_a = model(x_aligned, use_pallas=True)
    out_a = jax.block_until_ready(out_a)
    assert out_a.shape == (1024, _MOCK_OBS_DIM)
    assert aux_a is None
    assert jnp.allclose(out_a, model.value * jnp.ones((1024, 1), jnp.float32))

    # 5) 1-D input -> batch_size = 1 (spec: x.dim() > 1 else 1).
    x_1d = jax.random.normal(key, (4,), dtype=jnp.float32)
    out_1, aux_1 = model(x_1d)
    out_1 = jax.block_until_ready(out_1)
    assert out_1.shape == (1, _MOCK_OBS_DIM)
    assert aux_1 is None
    assert jnp.allclose(out_1, model.value * jnp.ones((1, 1), jnp.float32))

    print("KERNEL_OK")
</pallas_src>

<mosaic_0001>
module attributes {stable_mosaic.version = 11 : i64} {
  func.func @_mock_prob_kernel(%arg0: i32, %arg1: memref<1xf32, #tpu.memory_space<smem>>, %arg2: memref<8x128xf32, #tpu.memory_space<vmem>>) attributes {dimension_semantics = [#tpu.dimension_semantics<parallel>], iteration_bounds = array<i64: 1>, scalar_prefetch = 1 : i64, scratch_operands = 0 : i64, tpu.core_type = #tpu.core_type<tc>, window_params = [{transform_indices = @transform_0, window_bounds = array<i64: 8, 128>}]} {
    %c0 = arith.constant 0 : index
    %0 = memref.load %arg1[%c0] : memref<1xf32, #tpu.memory_space<smem>>
    %1 = vector.broadcast %0 : f32 to vector<8x128xf32>
    %c0_0 = arith.constant 0 : index
    %c0_1 = arith.constant 0 : index
    %2 = vector.load %arg2[%c0_0, %c0_1] : memref<8x128xf32, #tpu.memory_space<vmem>>, vector<8x128xf32>
    tpu.vector_store %arg2[%c0_0, %c0_1], %1 {strides = array<i32>} : memref<8x128xf32, #tpu.memory_space<vmem>>, vector<8x128xf32>,
    return
  }
  func.func @transform_0(%arg0: i32, %arg1: memref<1xf32, #tpu.memory_space<smem>>) -> (i32, i32) {
    %c0_i32 = arith.constant 0 : i32
    %c0_i32_0 = arith.constant 0 : i32
    return %arg0, %c0_i32 : i32, i32
  }
}

</mosaic_0001>

<llo_original>
// kernel: _mock_prob_pallas.1
$region0: #{_mock_prob_pallas.1}
  #allocation0 [shape = 'u32[]', space=smem, size = 0x4, offset = 0x4, fixed_abs, tag = 'smem constant byte address 0x4 - core index']
  #allocation1 [shape = 'u32[144,128]{1,0:T(1,128)}', space=vmem, size = 0x12000, scoped, tag = 'internal scratch']
  #allocation2 [shape = 's32[1]{0}', space=sflag, size = 0x4, scoped, tag = 'scoped memory for _mock_prob_pallas.1']
  #allocation3 [shape = 'f32[1]{0:T(128)S(6)}', space=smem, size = 0x200, scoped, tag = 'prefetched SMEM operand 0']
  %s0 = inlined_call_operand.<no memory space> [shape: f32[1], index: 0, kind: input, shape index: {}]
  %s1 = inlined_call_operand.vmem [shape: f32[1,128], index: 1, kind: output, shape index: {}]
  %s2 = sld [smem:[#allocation0]]
  $region40: #{_mock_prob_pallas.1} parent=0
    _
  %s4 = ssub.s32 1, %s2
  %s5 = scalar_select 0, %s4, %s2
  %6 = sst [smem:[#allocation3]] %s0
  $region1: #{_mock_prob_pallas.1} parent=0
    #allocation4 [shape = 'u8[4096]{0}', space=vmem, size = 0x1000, scoped, tag = 'output window, operand 0, single buffered']
    %s7 = sld [smem:[#allocation3]]
    %v8 = vstv %s7
    %9 = vst [vmem:[#allocation4] sm:$0xff] %v8
    // Predicated region
    $region2: #{_mock_prob_pallas.1} parent=1 // pred_check
      _
    $region3: #{_mock_prob_pallas.1} parent=1 // pred_check_branch
      %11 = sbr.rel (0) target = $region5
    $region4: #{_mock_prob_pallas.1} parent=1 // pred_region
      // Predicated region
      $region6: #{_mock_prob_pallas.1} parent=4 // pred_check
        _
      $region7: #{_mock_prob_pallas.1} parent=4 // pred_check_branch
        %13 = sbr.rel (0) target = $region9
      $region8: #{_mock_prob_pallas.1} parent=4 // pred_region
        // Predicated region
        $region10: #{_mock_prob_pallas.1} parent=8 // pred_check
          _
        $region11: #{_mock_prob_pallas.1} parent=8 // pred_check_branch
          %15 = sbr.rel target = $region13
        $region12: #{_mock_prob_pallas.1} parent=8 // pred_region
          // Predicated region
          $region25: #{_mock_prob_pallas.1} parent=12 // pred_check
            _
          $region26: #{_mock_prob_pallas.1} parent=12 // pred_check_branch
            %31 = sbr.rel (0) target = $region28
          $region27: #{_mock_prob_pallas.1} parent=12 // pred_region
            %s33 = ssub.s32 2, 1
            loop: start=0, step=1, limit=1
            $region29: #{_mock_prob_pallas.1} parent=27 // loop_pre_header
              _
            $region30: #{_mock_prob_pallas.1} parent=27 // loop_header
              %s35 = sphi 0, %s39
              %p36 = scmp.ge.s32.totalorder %s35, 1
              %s40 = sphi [#allocation4], [#allocation4]
              %s41 = sphi %s1, %s1
            $region31: #{_mock_prob_pallas.1} parent=27 // loop_header_branch
              %38 = sbr.rel (%p36) target = $region35
            $region32: #{_mock_prob_pallas.1} parent=27 // loop_body
              %v42 = vld [vmem:[%s40] sm:%s33]
              %43 = vst [vmem:[%s41] sm:%s33] %v42
            $region33: #{_mock_prob_pallas.1} parent=27 // loop_footer
              %s39 = sadd.s32 1, %s35
            $region34: #{_mock_prob_pallas.1} parent=27 // loop_footer_branch
              %34 = sbr.rel target = $region30
            $region35: #{_mock_prob_pallas.1} parent=27 // loop_exit
              _
          $region28: #{_mock_prob_pallas.1} parent=12 // pred_fallthru
            _
        $region13: #{_mock_prob_pallas.1} parent=8 // pred_fallthru
          _
        // Predicated region
        $region14: #{_mock_prob_pallas.1} parent=8 // pred_check
          _
        $region15: #{_mock_prob_pallas.1} parent=8 // pred_check_branch
          %17 = sbr.rel (0) target = $region17
        $region16: #{_mock_prob_pallas.1} parent=8 // pred_region
          %s19 = ssub.s32 2, 1
          loop: start=0, step=1, limit=1
          $region18: #{_mock_prob_pallas.1} parent=16 // loop_pre_header
            _
          $region19: #{_mock_prob_pallas.1} parent=16 // loop_header
            %s21 = sphi 0, %s25
            %p22 = scmp.ge.s32.totalorder %s21, 1
            %s26 = sphi [#allocation4], [#allocation4]
            %s27 = sphi %s1, %s1
          $region20: #{_mock_prob_pallas.1} parent=16 // loop_header_branch
            %24 = sbr.rel (%p22) target = $region24
          $region21: #{_mock_prob_pallas.1} parent=16 // loop_body
            %v28 = vld [vmem:[%s26] sm:%s19]
            %29 = vst [vmem:[%s27] sm:%s19] %v28
          $region22: #{_mock_prob_pallas.1} parent=16 // loop_footer
            %s25 = sadd.s32 1, %s21
          $region23: #{_mock_prob_pallas.1} parent=16 // loop_footer_branch
            %20 = sbr.rel target = $region19
          $region24: #{_mock_prob_pallas.1} parent=16 // loop_exit
            _
        $region17: #{_mock_prob_pallas.1} parent=8 // pred_fallthru
          _
      $region9: #{_mock_prob_pallas.1} parent=4 // pred_fallthru
        _
      %44 = vnop
    $region5: #{_mock_prob_pallas.1} parent=1 // pred_fallthru
      _
    // Predicated region
    $region36: #{_mock_prob_pallas.1} parent=1 // pred_check
      _
    $region37: #{_mock_prob_pallas.1} parent=1 // pred_check_branch
      %46 = sbr.rel (0) target = $region39
    $region38: #{_mock_prob_pallas.1} parent=1 // pred_region
      _
    $region39: #{_mock_prob_pallas.1} parent=1 // pred_fallthru
      _

</llo_original>
